<compile_context>
chip_gen: v7x
topology: tpu7x:2x2x1
jax: 0.10.0
libtpu: 0.0.40
codegen_flags: <defaults>
</compile_context>

<pallas_src>
import functools

import numpy as np
import jax
import jax.numpy as jnp
from jax import lax
from jax.experimental import pallas as pl
from jax.experimental.pallas import tpu as pltpu


# --------------------------- kernel 1: QKV projection ----------------------- #
def _qkv_proj_kernel(x_ref, w_ref, o_ref):
    x = x_ref[...].astype(jnp.bfloat16)                       # (TM, C)
    o = jnp.dot(x, w_ref[...], preferred_element_type=jnp.float32)
    o_ref[...] = o.astype(o_ref.dtype)                        # bf16 (TM, 3C)


# ---------------- kernel 2: attention + head-mix + output proj -------------- #
def _reattention_kernel(q_ref, k_ref, v_ref, wmix_ref, bme_ref,
                        wproj_ref, bproj_ref, o_ref, *, num_heads, head_dim):
    H, Dh = num_heads, head_dim
    q = q_ref[0]                                              # (TQ, C) bf16, scale pre-folded
    k = k_ref[0]                                              # (N, C)  bf16
    v = v_ref[0]                                              # (N, C)  bf16
    wmix = wmix_ref[...]                                      # (H, C)  f32
    TQ, C = q.shape

    acc = jnp.zeros((TQ, C), jnp.float32)
    for h in range(H):                                        # unrolled, one head live at a time
        qh = q[:, h * Dh:(h + 1) * Dh]                        # (TQ, Dh) bf16
        kh = k[:, h * Dh:(h + 1) * Dh]                        # (N, Dh)  bf16
        s = lax.dot_general(qh, kh, (((1,), (1,)), ((), ())),
                            preferred_element_type=jnp.float32)       # (TQ, N) f32
        s = s - jnp.max(s, axis=-1, keepdims=True)
        p = jnp.exp(s)
        p = p * pl.reciprocal(jnp.sum(p, axis=-1, keepdims=True), approx=True)
        # Full-width attn@V (MXU, K=N, 128-wide output); per-output-column head
        # mixing folded into a lane-aligned row scale.
        oh = jnp.dot(p.astype(jnp.bfloat16), v,
                     preferred_element_type=jnp.float32)              # (TQ, C) f32
        acc = acc + oh * wmix[h:h + 1, :]

    # Conv-bias + BN shift (* reatten_scale) contribution:  bm_i * colsum(v_i)
    colsum_v = jnp.sum(v.astype(jnp.float32), axis=0, keepdims=True)  # (1, C)
    acc = acc + bme_ref[...] * colsum_v

    out = jnp.dot(acc.astype(jnp.bfloat16), wproj_ref[...],
                  preferred_element_type=jnp.float32)                 # (TQ, C) f32
    o_ref[0] = (out + bproj_ref[...]).astype(o_ref.dtype)


# ---------------------------------- wrapper --------------------------------- #
def _pick_tile(M, candidates=(256, 128, 64, 32, 16, 8)):
    for t in candidates:
        if M % t == 0 and M // t >= 2:
            return t
    for t in candidates:
        if M % t == 0:
            return t
    return M


def reattention_pallas(x, params, *, num_heads, tq=None, tm=None):
    B, N, C = x.shape
    H = num_heads
    assert C % H == 0, "dim must divide num_heads"
    Dh = C // H
    assert C % 128 == 0, "dim should be lane-aligned (multiple of 128)"
    assert N % 8 == 0, "sequence length should be a multiple of 8"

    M = B * N
    if tm is None:
        tm = _pick_tile(M)
    if tq is None:
        tq = _pick_tile(N)
    assert M % tm == 0 and N % tq == 0

    vmem_limit = 64 * 1024 * 1024

    # ---- kernel 1: qkv = x @ Wqkv (bf16 operands, f32 accumulate) ----------
    x2 = x.reshape(M, C)
    qkv2 = pl.pallas_call(
        _qkv_proj_kernel,
        out_shape=jax.ShapeDtypeStruct((M, 3 * C), jnp.bfloat16),
        grid_spec=pltpu.PrefetchScalarGridSpec(
            num_scalar_prefetch=0,
            grid=(M // tm,),
            in_specs=[
                pl.BlockSpec((tm, C), lambda i: (i, 0)),
                pl.BlockSpec((C, 3 * C), lambda i: (0, 0)),      # resident weight
            ],
            out_specs=pl.BlockSpec((tm, 3 * C), lambda i: (i, 0)),
        ),
        compiler_params=pltpu.CompilerParams(
            dimension_semantics=("parallel",),
            vmem_limit_bytes=vmem_limit),
    )(x2, params["wqkv"])
    qkv = qkv2.reshape(B, N, 3 * C)

    # ---- kernel 2: attention + mixing + projection --------------------------
    kernel = functools.partial(_reattention_kernel, num_heads=H, head_dim=Dh)
    out = pl.pallas_call(
        kernel,
        out_shape=jax.ShapeDtypeStruct((B, N, C), x.dtype),
        grid_spec=pltpu.PrefetchScalarGridSpec(
            num_scalar_prefetch=0,
            grid=(B, N // tq),
            in_specs=[
                pl.BlockSpec((1, tq, C), lambda b, qi: (b, qi, 0)),  # Q tile
                pl.BlockSpec((1, N, C), lambda b, qi: (b, 0, 1)),    # K rows (full N)
                pl.BlockSpec((1, N, C), lambda b, qi: (b, 0, 2)),    # V rows (full N)
                pl.BlockSpec((H, C), lambda b, qi: (0, 0)),          # wmix_e (resident)
                pl.BlockSpec((1, C), lambda b, qi: (0, 0)),          # bm_e
                pl.BlockSpec((C, C), lambda b, qi: (0, 0)),          # Wproj (resident)
                pl.BlockSpec((1, C), lambda b, qi: (0, 0)),          # bproj
            ],
            out_specs=pl.BlockSpec((1, tq, C), lambda b, qi: (b, qi, 0)),
        ),
        compiler_params=pltpu.CompilerParams(
            dimension_semantics=("parallel", "parallel"),
            vmem_limit_bytes=vmem_limit),
    )(qkv, qkv, qkv, params["wmix_e"], params["bm_e"],
      params["wproj"], params["bproj"])
    return out


# ------------------------------ host-side prep ------------------------------ #
def build_params(wqkv_t, wr, br, bn_gamma, bn_beta, bn_mean, bn_var, bn_eps,
                 reatten_scale, wp_t, bp, num_heads):
    """Fold torch-layout weights into the bf16/f32 tensors the kernels consume."""
    C = wqkv_t.shape[1]
    H = num_heads
    Dh = C // H
    scale = float(Dh) ** -0.5

    W = jnp.transpose(wqkv_t).astype(jnp.float32)                 # (C, 3C)
    W = W.at[:, :C].multiply(scale)                               # fold qk scale into Wq

    bn_scale = bn_gamma / jnp.sqrt(bn_var + bn_eps)
    wm = reatten_scale * bn_scale[:, None] * wr[:, :, 0, 0]       # (H_out, H_in)
    bm = reatten_scale * (bn_scale * (br - bn_mean) + bn_beta)    # (H,)
    # wmix_e[h, i*Dh + d] = wm[i, h]   (per-source-head output-column scale)
    wmix_e = jnp.repeat(jnp.transpose(wm), Dh, axis=1)            # (H, C)
    bm_e = jnp.repeat(bm, Dh)[None, :]                            # (1, C)

    return {
        "wqkv": W.astype(jnp.bfloat16),
        "wmix_e": wmix_e.astype(jnp.float32),
        "bm_e": bm_e.astype(jnp.float32),
        "wproj": jnp.transpose(wp_t).astype(jnp.bfloat16),        # (C, C)
        "bproj": bp.reshape(1, C).astype(jnp.float32),
    }


# --------------------------- pure-JAX f32 reference -------------------------- #
def reattention_reference(x, wqkv_t, wr, br, bn_gamma, bn_beta, bn_mean, bn_var,
                          bn_eps, reatten_scale, wp_t, bp, num_heads):
    B, N, C = x.shape
    H = num_heads
    Dh = C // H
    scale = float(Dh) ** -0.5
    qkv = (x @ wqkv_t.T).reshape(B, N, 3, H, Dh)
    qkv = jnp.transpose(qkv, (2, 0, 3, 1, 4))
    q, k, v = qkv[0], qkv[1], qkv[2]
    attn = jnp.einsum('bhqd,bhkd->bhqk', q, k) * scale
    attn = jax.nn.softmax(attn, axis=-1)
    attn = jnp.einsum('oh,bhqk->boqk', wr[:, :, 0, 0], attn) + br[None, :, None, None]
    bn_scale = bn_gamma / jnp.sqrt(bn_var + bn_eps)
    attn = (attn - bn_mean[None, :, None, None]) * bn_scale[None, :, None, None] \
        + bn_beta[None, :, None, None]
    attn = attn * reatten_scale
    out = jnp.einsum('bhqk,bhkd->bhqd', attn, v)
    out = jnp.transpose(out, (0, 2, 1, 3)).reshape(B, N, C)
    return out @ wp_t.T + bp[None, None, :]


# ----------------------------------- main ------------------------------------ #
if __name__ == "__main__":
    B, N, dim, num_heads = 2, 64, 128, 8          # head_dim = 16
    bn_eps = 1e-5
    reatten_scale = 1.0                           # transform_scale=False (default)

    key = jax.random.PRNGKey(0)
    ks = jax.random.split(key, 11)

    x = jax.random.normal(ks[0], (B, N, dim), jnp.float32)

    # qkv: Linear(dim, 3*dim, bias=False)   (torch layout: (out, in))
    wqkv_t = 0.1 * jax.random.normal(ks[1], (3 * dim, dim), jnp.float32)
    # reatten_matrix: Conv2d(H, H, 1, 1) with bias
    wr = 0.3 * jax.random.normal(ks[2], (num_heads, num_heads, 1, 1), jnp.float32)
    br = 0.1 * jax.random.normal(ks[3], (num_heads,), jnp.float32)
    # var_norm: BatchNorm2d(H) (eval-mode running stats)
    bn_gamma = 1.0 + 0.1 * jax.random.normal(ks[4], (num_heads,), jnp.float32)
    bn_beta = 0.1 * jax.random.normal(ks[5], (num_heads,), jnp.float32)
    bn_mean = 0.1 * jax.random.normal(ks[6], (num_heads,), jnp.float32)
    bn_var = jax.random.uniform(ks[7], (num_heads,), jnp.float32, 0.5, 1.5)
    # proj: Linear(dim, dim) with bias
    wp_t = 0.1 * jax.random.normal(ks[8], (dim, dim), jnp.float32)
    bp = 0.1 * jax.random.normal(ks[9], (dim,), jnp.float32)

    params = build_params(wqkv_t, wr, br, bn_gamma, bn_beta, bn_mean, bn_var,
                          bn_eps, reatten_scale, wp_t, bp, num_heads)

    out = jax.block_until_ready(
        reattention_pallas(x, params, num_heads=num_heads))
    ref = jax.block_until_ready(
        reattention_reference(x, wqkv_t, wr, br, bn_gamma, bn_beta, bn_mean,
                              bn_var, bn_eps, reatten_scale, wp_t, bp, num_heads))

    assert out.shape == (B, N, dim), out.shape
    # bf16 MXU operands -> looser tolerance than the all-f32 variant.
    np.testing.assert_allclose(np.asarray(out), np.asarray(ref),
                               rtol=5e-2, atol=5e-2)
    print("KERNEL_OK")
</pallas_src>

<mosaic_0001>
module attributes {stable_mosaic.version = 11 : i64} {
  func.func @_qkv_proj_kernel(%arg0: i32, %arg1: memref<64x128xf32, #tpu.memory_space<vmem>>, %arg2: memref<128x384xbf16, #tpu.memory_space<vmem>>, %arg3: memref<64x384xbf16, #tpu.memory_space<vmem>>) attributes {dimension_semantics = [#tpu.dimension_semantics<parallel>], iteration_bounds = array<i64: 2>, scalar_prefetch = 0 : i64, scratch_operands = 0 : i64, tpu.core_type = #tpu.core_type<tc>, window_params = [{transform_indices = @transform_0, window_bounds = array<i64: 64, 128>}, {pipeline_mode = #tpu.pipeline_mode<synchronous>, transform_indices = @transform_1, window_bounds = array<i64: 128, 384>}, {transform_indices = @transform_2, window_bounds = array<i64: 64, 384>}]} {
    %c0 = arith.constant 0 : index
    %c0_0 = arith.constant 0 : index
    %0 = vector.load %arg1[%c0, %c0_0] : memref<64x128xf32, #tpu.memory_space<vmem>>, vector<64x128xf32>
    %1 = arith.truncf %0 : vector<64x128xf32> to vector<64x128xbf16>
    %c0_1 = arith.constant 0 : index
    %c0_2 = arith.constant 0 : index
    %2 = vector.load %arg2[%c0_1, %c0_2] : memref<128x384xbf16, #tpu.memory_space<vmem>>, vector<128x384xbf16>
    %cst = arith.constant dense<0.000000e+00> : vector<64x384xf32>
    %3 = tpu.matmul %1, %2, %cst {dimension_numbers = #tpu.dot_dimension_numbers<[1], [0], [0], [1], [0, 0, 1, 1], [], []>} : vector<64x128xbf16>, vector<128x384xbf16>, vector<64x384xf32> -> vector<64x384xf32>
    %4 = arith.truncf %3 : vector<64x384xf32> to vector<64x384xbf16>
    %c0_3 = arith.constant 0 : index
    %c0_4 = arith.constant 0 : index
    %5 = vector.load %arg3[%c0_3, %c0_4] : memref<64x384xbf16, #tpu.memory_space<vmem>>, vector<64x384xbf16>
    tpu.vector_store %arg3[%c0_3, %c0_4], %4 {strides = array<i32>} : memref<64x384xbf16, #tpu.memory_space<vmem>>, vector<64x384xbf16>,
    return
  }
  func.func @transform_0(%arg0: i32) -> (i32, i32) {
    %c0_i32 = arith.constant 0 : i32
    %c0_i32_0 = arith.constant 0 : i32
    return %arg0, %c0_i32 : i32, i32
  }
  func.func @transform_1(%arg0: i32) -> (i32, i32) {
    %c0_i32 = arith.constant 0 : i32
    %c0_i32_0 = arith.constant 0 : i32
    %c0_i32_1 = arith.constant 0 : i32
    return %c0_i32, %c0_i32_0 : i32, i32
  }
  func.func @transform_2(%arg0: i32) -> (i32, i32) {
    %c0_i32 = arith.constant 0 : i32
    %c0_i32_0 = arith.constant 0 : i32
    return %arg0, %c0_i32 : i32, i32
  }
}

</mosaic_0001>

<llo_original>
// kernel: tpu_custom_call.1
$region0: #{tpu_custom_call.1}
  #allocation0 [shape = 'u32[]', space=smem, size = 0x4, offset = 0x4, fixed_abs, tag = 'smem constant byte address 0x4 - core index']
  #allocation1 [shape = 'u32[144,128]{1,0:T(1,128)}', space=vmem, size = 0x12000, scoped, tag = 'internal scratch']
  %s0 = inlined_call_operand.hbm [shape: f32[128,128], index: 0, kind: input, shape index: {}]
  %s1 = inlined_call_operand.hbm [shape: bf16[128,384], index: 1, kind: input, shape index: {}]
  %s2 = inlined_call_operand.hbm [shape: bf16[128,384], index: 2, kind: output, shape index: {}]
  %s3 = sld [smem:[#allocation0]]
  $region49: #{tpu_custom_call.1} parent=0
    _
  %s5 = ssub.s32 1, %s3
  %s6 = scalar_select 0, %s5, %s3
  $region1: #{tpu_custom_call.1} parent=0
    #allocation2 [shape = 'u8[65536]{0}', space=vmem, size = 0x10000, scoped, tag = 'input window, operand 0']
    #allocation3 [shape = 's32[2]{0}', space=sflag, size = 0x8, scoped, tag = 'scoped memory for tpu_custom_call.1']
    #allocation4 [shape = 's32[2]{0}', space=sflag, size = 0x8, scoped, tag = 'scoped memory for tpu_custom_call.1']
    #allocation5 [shape = 'u8[98304]{0}', space=vmem, size = 0x18000, scoped, tag = 'input window, operand 1, single buffered']
    #allocation6 [shape = 's32[1]{0}', space=sflag, size = 0x4, scoped, tag = 'scoped memory for tpu_custom_call.1']
    #allocation7 [shape = 'u8[98304]{0}', space=vmem, size = 0x18000, scoped, tag = 'output window, operand 0']
    %7 = vsyncpa [#allocation3], 0
    %s8 = scalar_lea.sflag [#allocation3], 1
    %9 = vsyncpa %s8, 0
    %10 = vsyncpa [#allocation6], 0
    %11 = vsyncpa [#allocation4], 0
    %s12 = scalar_lea.sflag [#allocation4], 1
    %13 = vsyncpa %s12, 0
    loop: start=0, step=1, limit=4
    $region2: #{tpu_custom_call.1} parent=1 // loop_pre_header
      _
    $region3: #{tpu_custom_call.1} parent=1 // loop_header
      %s15 = sphi 0, %s19
      %p16 = scmp.ge.s32.totalorder %s15, 4
      %s25 = sphi 0, %s27
      %s28 = sphi 0, %s25
      %s29 = sphi 0, %s28
      %s45 = sphi 0, %s29
      %s49 = sphi 0, %s49
      %s51 = sphi 0, %s49
      %s52 = sphi 0, %s51
      %s66 = sphi 0, %s52
      %s72 = sphi 0, %s74
      %s75 = sphi 0, %s72
      %s76 = sphi 0, %s75
      %s92 = sphi 0, %s76
    $region4: #{tpu_custom_call.1} parent=1 // loop_header_branch
      %18 = sbr.rel (%p16) target = $region8
    $region5: #{tpu_custom_call.1} parent=1 // loop_body
      %s20 = ssub.s32 %s15, 1
      %s21 = ssub.s32 %s15, 2
      %s22 = sadd.s32 %s15, 1
      %s23 = ssub.s32 %s15, %s22
      %p24 = scmp.eq.s32.totalorder %s23, 0
      %s26 = sadd.s32 %s25, 1
      %s27 = scalar_select %p24, %s25, %s26
      %p30 = pneg %p24
      %p31 = scmp.eq.s32.totalorder %s15, 1
      %p32 = por %p30, %p31
      %p33 = scmp.ne.s32.totalorder %s25, %s28
      %p34 = scmp.eq.s32.totalorder %s15, 0
      %p35 = por %p33, %p34
      %p36 = scmp.ne.s32.totalorder %s25, %s28
      %p37 = scmp.eq.s32.totalorder %s20, 1
      %p38 = por %p36, %p37
      %p39 = scmp.ne.s32.totalorder %s28, %s29
      %p40 = scmp.eq.s32.totalorder %s20, 0
      %p41 = por %p39, %p40
      %p42 = scmp.ne.s32.totalorder %s28, %s29
      %p43 = scmp.eq.s32.totalorder %s21, 1
      %p44 = por %p42, %p43
      %p46 = scmp.ne.s32.totalorder %s29, %s45
      %p47 = scmp.eq.s32.totalorder %s21, 0
      %p48 = por %p46, %p47
      %s50 = sadd.s32 %s49, 1
      %p53 = scmp.eq.s32.totalorder %s15, 1
      %p54 = scmp.ne.s32.totalorder %s49, %s51
      %p55 = scmp.eq.s32.totalorder %s15, 0
      %p56 = por %p54, %p55
      %p57 = scmp.ne.s32.totalorder %s49, %s51
      %p58 = scmp.eq.s32.totalorder %s20, 1
      %p59 = por %p57, %p58
      %p60 = scmp.ne.s32.totalorder %s51, %s52
      %p61 = scmp.eq.s32.totalorder %s20, 0
      %p62 = por %p60, %p61
      %p63 = scmp.ne.s32.totalorder %s51, %s52
      %p64 = scmp.eq.s32.totalorder %s21, 1
      %p65 = por %p63, %p64
      %p67 = scmp.ne.s32.totalorder %s52, %s66
      %p68 = scmp.eq.s32.totalorder %s21, 0
      %p69 = por %p67, %p68
      %s70 = ssub.s32 %s15, %s22
      %p71 = scmp.eq.s32.totalorder %s70, 0
      %s73 = sadd.s32 %s72, 1
      %s74 = scalar_select %p71, %s72, %s73
      %p77 = pneg %p71
      %p78 = scmp.eq.s32.totalorder %s15, 1
      %p79 = por %p77, %p78
      %p80 = scmp.ne.s32.totalorder %s72, %s75
      %p81 = scmp.eq.s32.totalorder %s15, 0
      %p82 = por %p80, %p81
      %p83 = scmp.ne.s32.totalorder %s72, %s75
      %p84 = scmp.eq.s32.totalorder %s20, 1
      %p85 = por %p83, %p84
      %p86 = scmp.ne.s32.totalorder %s75, %s76
      %p87 = scmp.eq.s32.totalorder %s20, 0
      %p88 = por %p86, %p87
      %p89 = scmp.ne.s32.totalorder %s75, %s76
      %p90 = scmp.eq.s32.totalorder %s21, 1
      %p91 = por %p89, %p90
      %p93 = scmp.ne.s32.totalorder %s76, %s92
      %p94 = scmp.eq.s32.totalorder %s21, 0
      %p95 = por %p93, %p94
      %p96 = scmp.le.s32.totalorder 1, %s15
      %p97 = scmp.lt.s32.totalorder %s15, 3
      %p98 = pnand %p96, %p97
      %p99 = pneg %p98
      // Predicated region
      $region9: #{tpu_custom_call.1} parent=5 // pred_check
        _
      $region10: #{tpu_custom_call.1} parent=5 // pred_check_branch
        %101 = sbr.rel (%p98) target = $region12
      $region11: #{tpu_custom_call.1} parent=5 // pred_region
        %s102 = ssub.s32 %s15, 1
        // Predicated region
        $region13: #{tpu_custom_call.1} parent=11 // pred_check
          %p103 = pneg %p62
        $region14: #{tpu_custom_call.1} parent=11 // pred_check_branch
          %105 = sbr.rel (%p103) target = $region16
        $region15: #{tpu_custom_call.1} parent=11 // pred_region
          %s107 = ssub.s32 3072, 3072
          %108 = vsyncadd [#allocation6], %s107
          %s109 = sshll.u32 [#allocation5], 4
          %s110 = int_to_ptr.vmem [resolvable:$true] %s109
          %115 = dma.hbm_to_vmem [thread:$0]  %s1, 3072, %s110, [#allocation6], 192, 192, 12
        $region16: #{tpu_custom_call.1} parent=11 // pred_fallthru
          _
      $region12: #{tpu_custom_call.1} parent=5 // pred_fallthru
        _
      %p116 = scmp.lt.s32.totalorder %s15, 2
      // Predicated region
      $region17: #{tpu_custom_call.1} parent=5 // pred_check
        %p117 = pneg %p116
      $region18: #{tpu_custom_call.1} parent=5 // pred_check_branch
        %119 = sbr.rel (%p117) target = $region20
      $region19: #{tpu_custom_call.1} parent=5 // pred_region
        // Predicated region
        $region21: #{tpu_custom_call.1} parent=19 // pred_check
          %p120 = pneg %p35
        $region22: #{tpu_custom_call.1} parent=19 // pred_check_branch
          %122 = sbr.rel (%p120) target = $region24
        $region23: #{tpu_custom_call.1} parent=19 // pred_region
          %s123 = sand.u32 %s25, 1
          %s124 = scalar_lea.sflag [#allocation3], %s123
          %s125 = sand.u32 %s25, 1
          %s126 = smul.addr %s125, 64
          %s127 = scalar_lea.vmem [#allocation2], %s126
          %s128 = smul.u32 8, %s15
          %s130 = ssub.s32 1024, 1024
          %131 = vsyncadd %s124, %s130
          %s132 = smul.addr %s128, 128
          %s133 = scalar_lea.hbm %s0, %s132
          %s134 = sshll.u32 %s127, 4
          %s135 = int_to_ptr.vmem [resolvable:$true] %s134
          %140 = dma.hbm_to_vmem [thread:$0]  %s133, 1024, %s135, %s124, 128, 128, 8
        $region24: #{tpu_custom_call.1} parent=19 // pred_fallthru
          _
      $region20: #{tpu_custom_call.1} parent=5 // pred_fallthru
        _
      %p141 = scmp.le.s32.totalorder 1, %s15
      %p142 = scmp.lt.s32.totalorder %s15, 3
      %p143 = pnand %p141, %p142
      %p144 = pneg %p143
      // Predicated region
      $region25: #{tpu_custom_call.1} parent=5 // pred_check
        _
      $region26: #{tpu_custom_call.1} parent=5 // pred_check_branch
        %146 = sbr.rel (%p143) target = $region28
      $region27: #{tpu_custom_call.1} parent=5 // pred_region
        %s147 = ssub.s32 %s15, 1
        %s148 = sand.u32 %s28, 1
        %s149 = scalar_lea.sflag [#allocation3], %s148
        %s150 = sand.u32 %s28, 1
        %s151 = smul.addr %s150, 64
        %s152 = scalar_lea.vmem [#allocation2], %s151
        // Predicated region
        $region29: #{tpu_custom_call.1} parent=27 // pred_check
          %p153 = pneg %p41
        $region30: #{tpu_custom_call.1} parent=27 // pred_check_branch
          %155 = sbr.rel (%p153) target = $region32
        $region31: #{tpu_custom_call.1} parent=27 // pred_region
          %156 = dma.done %s149, 1024
        $region32: #{tpu_custom_call.1} parent=27 // pred_fallthru
          _
        // Predicated region
        $region33: #{tpu_custom_call.1} parent=27 // pred_check
          %p157 = pneg %p62
        $region34: #{tpu_custom_call.1} parent=27 // pred_check_branch
          %159 = sbr.rel (%p157) target = $region36
        $region35: #{tpu_custom_call.1} parent=27 // pred_region
          %160 = dma.done [#allocation6], 3072
        $region36: #{tpu_custom_call.1} parent=27 // pred_fallthru
          _
        %s161 = sand.u32 %s28, 1
        %s162 = scalar_lea.sflag [#allocation3], %s161
        %s163 = sand.u32 %s28, 1
        %s164 = smul.addr %s163, 64
        %s165 = scalar_lea.vmem [#allocation2], %s164
        %p166 = pneg %p41
        %p167 = pneg %p38
        %p168 = pneg %p62
        %p169 = pneg %p59
        %p170 = pneg %p88
        %p171 = pneg %p85
        %s172 = sand.u32 %s75, 1
        %s173 = scalar_lea.sflag [#allocation4], %s172
        %s174 = sand.u32 %s75, 1
        %s175 = smul.addr %s174, 96
        %s176 = scalar_lea.vmem [#allocation7], %s175
        %s177 = smul.u32 8, %s20
        %s178 = smul.u32 8, %s20
        %v180 = vld [vmem:[%s152] sm:$0xff]
        %v181 = vld [vmem:[%s152 + $0x8] sm:$0xff]
        %v182 = vld [vmem:[%s152 + $0x10] sm:$0xff]
        %v183 = vld [vmem:[%s152 + $0x18] sm:$0xff]
        %v184 = vld [vmem:[%s152 + $0x20] sm:$0xff]
        %v185 = vld [vmem:[%s152 + $0x28] sm:$0xff]
        %v186 = vld [vmem:[%s152 + $0x30] sm:$0xff]
        %v187 = vld [vmem:[%s152 + $0x38] sm:$0xff]
        %v188 = vpack.c.bf16 %v181, %v180
        %v189 = vpack.c.bf16 %v183, %v182
        %v190 = vpack.c.bf16 %v185, %v184
        %v191 = vpack.c.bf16 %v187, %v186
        %v192 = vld [vmem:[#allocation5] sm:$0xff]
        %v193 = vld [vmem:[#allocation5 + $0x8] sm:$0xf]
        %v194 = vld [vmem:[#allocation5 + $0xc] sm:$0xff]
        %v195 = vld [vmem:[#allocation5 + $0x14] sm:$0xf]
        %v196 = vld [vmem:[#allocation5 + $0x18] sm:$0xff]
        %v197 = vld [vmem:[#allocation5 + $0x20] sm:$0xf]
        %v198 = vld [vmem:[#allocation5 + $0x24] sm:$0xff]
        %v199 = vld [vmem:[#allocation5 + $0x2c] sm:$0xf]
        %v200 = vld [vmem:[#allocation5 + $0x30] sm:$0xff]
        %v201 = vld [vmem:[#allocation5 + $0x38] sm:$0xf]
        %v202 = vld [vmem:[#allocation5 + $0x3c] sm:$0xff]
        %v203 = vld [vmem:[#allocation5 + $0x44] sm:$0xf]
        %v204 = vld [vmem:[#allocation5 + $0x48] sm:$0xff]
        %v205 = vld [vmem:[#allocation5 + $0x50] sm:$0xf]
        %v206 = vld [vmem:[#allocation5 + $0x54] sm:$0xff]
        %v207 = vld [vmem:[#allocation5 + $0x5c] sm:$0xf]
        %v208 = vld [vmem:[#allocation5 + $0x60] sm:$0xff]
        %v209 = vld [vmem:[#allocation5 + $0x68] sm:$0xf]
        %v210 = vld [vmem:[#allocation5 + $0x6c] sm:$0xff]
        %v211 = vld [vmem:[#allocation5 + $0x74] sm:$0xf]
        %v212 = vld [vmem:[#allocation5 + $0x78] sm:$0xff]
        %v213 = vld [vmem:[#allocation5 + $0x80] sm:$0xf]
        %v214 = vld [vmem:[#allocation5 + $0x84] sm:$0xff]
        %v215 = vld [vmem:[#allocation5 + $0x8c] sm:$0xf]
        %v216 = vld [vmem:[#allocation5 + $0x90] sm:$0xff]
        %v217 = vld [vmem:[#allocation5 + $0x98] sm:$0xf]
        %v218 = vld [vmem:[#allocation5 + $0x9c] sm:$0xff]
        %v219 = vld [vmem:[#allocation5 + $0xa4] sm:$0xf]
        %v220 = vld [vmem:[#allocation5 + $0xa8] sm:$0xff]
        %v221 = vld [vmem:[#allocation5 + $0xb0] sm:$0xf]
        %v222 = vld [vmem:[#allocation5 + $0xb4] sm:$0xff]
        %v223 = vld [vmem:[#allocation5 + $0xbc] sm:$0xf]
        %v256 = vunpack.c.l.b16 %v192
        %v257 = vunpack.c.h.b16 %v192
        %v258 = vunpack.c.l.b16 %v193
        %v259 = vunpack.c.l.b16 %v194
        %v260 = vunpack.c.h.b16 %v194
        %v261 = vunpack.c.l.b16 %v195
        %v262 = vunpack.c.l.b16 %v196
        %v263 = vunpack.c.h.b16 %v196
        %v264 = vunpack.c.l.b16 %v197
        %v265 = vunpack.c.l.b16 %v198
        %v266 = vunpack.c.h.b16 %v198
        %v267 = vunpack.c.l.b16 %v199
        %v268 = vunpack.c.l.b16 %v200
        %v269 = vunpack.c.h.b16 %v200
        %v270 = vunpack.c.l.b16 %v201
        %v271 = vunpack.c.l.b16 %v202
        %v272 = vunpack.c.h.b16 %v202
        %v273 = vunpack.c.l.b16 %v203
        %v274 = vunpack.c.l.b16 %v204
        %v275 = vunpack.c.h.b16 %v204
        %v276 = vunpack.c.l.b16 %v205
        %v277 = vunpack.c.l.b16 %v206
        %v278 = vunpack.c.h.b16 %v206
        %v279 = vunpack.c.l.b16 %v207
        %v280 = vunpack.c.l.b16 %v208
        %v281 = vunpack.c.h.b16 %v208
        %v282 = vunpack.c.l.b16 %v209
        %v283 = vunpack.c.l.b16 %v210
        %v284 = vunpack.c.h.b16 %v210
        %v285 = vunpack.c.l.b16 %v211
        %v286 = vunpack.c.l.b16 %v212
        %v287 = vunpack.c.h.b16 %v212
        %v288 = vunpack.c.l.b16 %v213
        %v289 = vunpack.c.l.b16 %v214
        %v290 = vunpack.c.h.b16 %v214
        %v291 = vunpack.c.l.b16 %v215
        %v292 = vunpack.c.l.b16 %v216
        %v293 = vunpack.c.h.b16 %v216
        %v294 = vunpack.c.l.b16 %v217
        %v295 = vunpack.c.l.b16 %v218
        %v296 = vunpack.c.h.b16 %v218
        %v297 = vunpack.c.l.b16 %v219
        %v298 = vunpack.c.l.b16 %v220
        %v299 = vunpack.c.h.b16 %v220
        %v300 = vunpack.c.l.b16 %v221
        %v301 = vunpack.c.l.b16 %v222
        %v302 = vunpack.c.h.b16 %v222
        %v303 = vunpack.c.l.b16 %v223
        %v304 = vpack.c.b16 %v259, %v256
        %v305 = vpack.c.b16 %v260, %v257
        %v306 = vpack.c.b16 %v261, %v258
        %v307 = vpack.c.b16 %v265, %v262
        %v308 = vpack.c.b16 %v266, %v263
        %v309 = vpack.c.b16 %v267, %v264
        %v310 = vpack.c.b16 %v271, %v268
        %v311 = vpack.c.b16 %v272, %v269
        %v312 = vpack.c.b16 %v273, %v270
        %v313 = vpack.c.b16 %v277, %v274
        %v314 = vpack.c.b16 %v278, %v275
        %v315 = vpack.c.b16 %v279, %v276
        %v316 = vpack.c.b16 %v283, %v280
        %v317 = vpack.c.b16 %v284, %v281
        %v318 = vpack.c.b16 %v285, %v282
        %v319 = vpack.c.b16 %v289, %v286
        %v320 = vpack.c.b16 %v290, %v287
        %v321 = vpack.c.b16 %v291, %v288
        %v322 = vpack.c.b16 %v295, %v292
        %v323 = vpack.c.b16 %v296, %v293
        %v324 = vpack.c.b16 %v297, %v294
        %v325 = vpack.c.b16 %v301, %v298
        %v326 = vpack.c.b16 %v302, %v299
        %v327 = vpack.c.b16 %v303, %v300
        %352 = vmatprep.subr.bf16.mxu0 %v305
        %353 = vmatpush1.bf16.msra.mxu0 %v304
        %354 = vmatprep.subr.bf16.mxu0 %v308
        %355 = vmatpush1.bf16.msra.mxu0 %v307
        %356 = vmatprep.subr.bf16.mxu0 %v311
        %357 = vmatpush1.bf16.msra.mxu0 %v310
        %358 = vmatprep.subr.bf16.mxu0 %v314
        %359 = vmatpush1.bf16.msra.mxu0 %v313
        %360 = vmatprep.subr.bf16.mxu0 %v317
        %361 = vmatpush1.bf16.msra.mxu0 %v316
        %362 = vmatprep.subr.bf16.mxu0 %v320
        %363 = vmatpush1.bf16.msra.mxu0 %v319
        %364 = vmatprep.subr.bf16.mxu0 %v323
        %365 = vmatpush1.bf16.msra.mxu0 %v322
        %366 = vmatprep.subr.bf16.mxu0 %v326
        %367 = vmatpush1.bf16.msra.mxu0 %v325
        %368 = vmatprep.subr.bf16.mxu0 0
        %369 = vmatpush1.bf16.msra.mxu0 0
        %370 = vmatprep.subr.bf16.mxu0 0
        %371 = vmatpush1.bf16.msra.mxu0 0
        %372 = vmatprep.subr.bf16.mxu0 0
        %373 = vmatpush1.bf16.msra.mxu0 0
        %374 = vmatprep.subr.bf16.mxu0 0
        %375 = vmatpush1.bf16.msra.mxu0 0
        %376 = vmatprep.subr.bf16.mxu0 0
        %377 = vmatpush1.bf16.msra.mxu0 0
        %378 = vmatprep.subr.bf16.mxu0 0
        %379 = vmatpush1.bf16.msra.mxu0 0
        %380 = vmatprep.subr.bf16.mxu0 0
        %381 = vmatpush1.bf16.msra.mxu0 0
        %382 = vmatprep.subr.bf16.mxu0 0
        %383 = vmatpush1.bf16.msra.mxu0 0
        %384 = vmatprep.mubr.bf16.mxu0 0
        %385 = vmatmul.mubr.bf16.gmra.mrb[0].mxu0 %v188
        %v386 = vpop.f32.mrb[0].mxu0
        %v387 = vadd.f32 0.0, %v386
        %v388 = vpop.f32.mrb[0].mxu0
        %v389 = vadd.f32 0.0, %v388
        %v390 = vpop.f32.mrb[0].mxu0
        %v391 = vadd.f32 0.0, %v390
        %v392 = vpop.f32.mrb[0].mxu0
        %v393 = vadd.f32 0.0, %v392
        %394 = vmatprep.mubr.bf16.mxu0 0
        %395 = vmatmul.mubr.bf16.gmra.mrb[0].mxu0 %v189
        %v396 = vpop.f32.mrb[0].mxu0
        %v397 = vadd.f32 0.0, %v396
        %v398 = vpop.f32.mrb[0].mxu0
        %v399 = vadd.f32 0.0, %v398
        %v400 = vpop.f32.mrb[0].mxu0
        %v401 = vadd.f32 0.0, %v400
        %v402 = vpop.f32.mrb[0].mxu0
        %v403 = vadd.f32 0.0, %v402
        %404 = vmatprep.mubr.bf16.mxu0 0
        %405 = vmatmul.mubr.bf16.gmra.mrb[0].mxu0 %v190
        %v406 = vpop.f32.mrb[0].mxu0
        %v407 = vadd.f32 0.0, %v406
        %v408 = vpop.f32.mrb[0].mxu0
        %v409 = vadd.f32 0.0, %v408
        %v410 = vpop.f32.mrb[0].mxu0
        %v411 = vadd.f32 0.0, %v410
        %v412 = vpop.f32.mrb[0].mxu0
        %v413 = vadd.f32 0.0, %v412
        %414 = vmatprep.mubr.bf16.mxu0 0
        %415 = vmatmul.mubr.bf16.gmra.mrb[0].mxu0 %v191
        %v416 = vpop.f32.mrb[0].mxu0
        %v417 = vadd.f32 0.0, %v416
        %v418 = vpop.f32.mrb[0].mxu0
        %v419 = vadd.f32 0.0, %v418
        %v420 = vpop.f32.mrb[0].mxu0
        %v421 = vadd.f32 0.0, %v420
        %v422 = vpop.f32.mrb[0].mxu0
        %v423 = vadd.f32 0.0, %v422
        %424 = vdwg.mxu0
        %425 = vmatprep.subr.bf16.mxu0 0
        %426 = vmatpush1.bf16.msra.mxu0 %v306
        %427 = vmatprep.subr.bf16.mxu0 0
        %428 = vmatpush1.bf16.msra.mxu0 %v309
        %429 = vmatprep.subr.bf16.mxu0 0
        %430 = vmatpush1.bf16.msra.mxu0 %v312
        %431 = vmatprep.subr.bf16.mxu0 0
        %432 = vmatpush1.bf16.msra.mxu0 %v315
        %433 = vmatprep.subr.bf16.mxu0 0
        %434 = vmatpush1.bf16.msra.mxu0 %v318
        %435 = vmatprep.subr.bf16.mxu0 0
        %436 = vmatpush1.bf16.msra.mxu0 %v321
        %437 = vmatprep.subr.bf16.mxu0 0
        %438 = vmatpush1.bf16.msra.mxu0 %v324
        %439 = vmatprep.subr.bf16.mxu0 0
        %440 = vmatpush1.bf16.msra.mxu0 %v327
        %441 = vmatprep.subr.bf16.mxu0 0
        %442 = vmatpush1.bf16.msra.mxu0 0
        %443 = vmatprep.subr.bf16.mxu0 0
        %444 = vmatpush1.bf16.msra.mxu0 0
        %445 = vmatprep.subr.bf16.mxu0 0
        %446 = vmatpush1.bf16.msra.mxu0 0
        %447 = vmatprep.subr.bf16.mxu0 0
        %448 = vmatpush1.bf16.msra.mxu0 0
        %449 = vmatprep.subr.bf16.mxu0 0
        %450 = vmatpush1.bf16.msra.mxu0 0
        %451 = vmatprep.subr.bf16.mxu0 0
        %452 = vmatpush1.bf16.msra.mxu0 0
        %453 = vmatprep.subr.bf16.mxu0 0
        %454 = vmatpush1.bf16.msra.mxu0 0
        %455 = vmatprep.subr.bf16.mxu0 0
        %456 = vmatpush1.bf16.msra.mxu0 0
        %457 = vmatprep.mubr.bf16.mxu0 0
        %458 = vmatmul.mubr.bf16.gmra.mrb[0].mxu0 %v188
        %v459 = vpop.f32.mrb[0].mxu0
        %v460 = vadd.f32 0.0, %v459
        %v461 = vpop.f32.mrb[0].mxu0
        %v462 = vpop.f32.mrb[0].mxu0
        %v463 = vadd.f32 0.0, %v462
        %v464 = vpop.f32.mrb[0].mxu0
        %465 = vmatprep.mubr.bf16.mxu0 0
        %466 = vmatmul.mubr.bf16.gmra.mrb[0].mxu0 %v189
        %v467 = vpop.f32.mrb[0].mxu0
        %v468 = vadd.f32 0.0, %v467
        %v469 = vpop.f32.mrb[0].mxu0
        %v470 = vpop.f32.mrb[0].mxu0
        %v471 = vadd.f32 0.0, %v470
        %v472 = vpop.f32.mrb[0].mxu0
        %473 = vmatprep.mubr.bf16.mxu0 0
        %474 = vmatmul.mubr.bf16.gmra.mrb[0].mxu0 %v190
        %v475 = vpop.f32.mrb[0].mxu0
        %v476 = vadd.f32 0.0, %v475
        %v477 = vpop.f32.mrb[0].mxu0
        %v478 = vpop.f32.mrb[0].mxu0
        %v479 = vadd.f32 0.0, %v478
        %v480 = vpop.f32.mrb[0].mxu0
        %481 = vmatprep.mubr.bf16.mxu0 0
        %482 = vmatmul.mubr.bf16.gmra.mrb[0].mxu0 %v191
        %v483 = vpop.f32.mrb[0].mxu0
        %v484 = vadd.f32 0.0, %v483
        %v485 = vpop.f32.mrb[0].mxu0
        %v486 = vpop.f32.mrb[0].mxu0
        %v487 = vadd.f32 0.0, %v486
        %v488 = vpop.f32.mrb[0].mxu0
        %489 = vdwg.mxu0
        %v490 = vpack.c.bf16 %v391, %v387
        %v491 = vpack.c.bf16 %v393, %v389
        %v492 = vpack.c.bf16 %v463, %v460
        %v493 = vpack.c.bf16 %v401, %v397
        %v494 = vpack.c.bf16 %v403, %v399
        %v495 = vpack.c.bf16 %v471, %v468
        %v496 = vpack.c.bf16 %v411, %v407
        %v497 = vpack.c.bf16 %v413, %v409
        %v498 = vpack.c.bf16 %v479, %v476
        %v499 = vpack.c.bf16 %v421, %v417
        %v500 = vpack.c.bf16 %v423, %v419
        %v501 = vpack.c.bf16 %v487, %v484
        %v514 = vunpack.c.l.b16 %v490
        %v515 = vunpack.c.l.b16 %v491
        %v516 = vunpack.c.l.b16 %v492
        %v517 = vunpack.c.h.b16 %v490
        %v518 = vunpack.c.h.b16 %v491
        %v519 = vunpack.c.h.b16 %v492
        %v520 = vunpack.c.l.b16 %v493
        %v521 = vunpack.c.l.b16 %v494
        %v522 = vunpack.c.l.b16 %v495
        %v523 = vunpack.c.h.b16 %v493
        %v524 = vunpack.c.h.b16 %v494
        %v525 = vunpack.c.h.b16 %v495
        %v526 = vunpack.c.l.b16 %v496
        %v527 = vunpack.c.l.b16 %v497
        %v528 = vunpack.c.l.b16 %v498
        %v529 = vunpack.c.h.b16 %v496
        %v530 = vunpack.c.h.b16 %v497
        %v531 = vunpack.c.h.b16 %v498
        %v532 = vunpack.c.l.b16 %v499
        %v533 = vunpack.c.l.b16 %v500
        %v534 = vunpack.c.l.b16 %v501
        %v535 = vunpack.c.h.b16 %v499
        %v536 = vunpack.c.h.b16 %v500
        %v537 = vunpack.c.h.b16 %v501
        %v538 = vpack.c.b16 %v515, %v514
        %v539 = vpack.c.b16 %v516, %v516
        %v540 = vpack.c.b16 %v518, %v517
        %v541 = vpack.c.b16 %v519, %v519
        %v542 = vpack.c.b16 %v521, %v520
        %v543 = vpack.c.b16 %v522, %v522
        %v544 = vpack.c.b16 %v524, %v523
        %v545 = vpack.c.b16 %v525, %v525
        %v546 = vpack.c.b16 %v527, %v526
        %v547 = vpack.c.b16 %v528, %v528
        %v548 = vpack.c.b16 %v530, %v529
        %v549 = vpack.c.b16 %v531, %v531
        %v550 = vpack.c.b16 %v533, %v532
        %v551 = vpack.c.b16 %v534, %v534
        %v552 = vpack.c.b16 %v536, %v535
        %v553 = vpack.c.b16 %v537, %v537
        %570 = vst [vmem:[%s176] sm:$0xff] %v538
        %571 = vst [vmem:[%s176 + $0x8] sm:$0xf] %v539
        %572 = vst [vmem:[%s176 + $0xc] sm:$0xff] %v540
        %573 = vst [vmem:[%s176 + $0x14] sm:$0xf] %v541
        %574 = vst [vmem:[%s176 + $0x18] sm:$0xff] %v542
        %575 = vst [vmem:[%s176 + $0x20] sm:$0xf] %v543
        %576 = vst [vmem:[%s176 + $0x24] sm:$0xff] %v544
        %577 = vst [vmem:[%s176 + $0x2c] sm:$0xf] %v545
        %578 = vst [vmem:[%s176 + $0x30] sm:$0xff] %v546
        %579 = vst [vmem:[%s176 + $0x38] sm:$0xf] %v547
        %580 = vst [vmem:[%s176 + $0x3c] sm:$0xff] %v548
        %581 = vst [vmem:[%s176 + $0x44] sm:$0xf] %v549
        %582 = vst [vmem:[%s176 + $0x48] sm:$0xff] %v550
        %583 = vst [vmem:[%s176 + $0x50] sm:$0xf] %v551
        %584 = vst [vmem:[%s176 + $0x54] sm:$0xff] %v552
        %585 = vst [vmem:[%s176 + $0x5c] sm:$0xf] %v553
        %s586 = sand.u32 %s75, 1
        %s587 = scalar_lea.sflag [#allocation4], %s586
        %s588 = sand.u32 %s75, 1
        %s589 = smul.addr %s588, 96
        %s590 = scalar_lea.vmem [#allocation7], %s589
        // Predicated region
        $region37: #{tpu_custom_call.1} parent=27 // pred_check
          %p591 = pneg %p85
        $region38: #{tpu_custom_call.1} parent=27 // pred_check_branch
          %593 = sbr.rel (%p591) target = $region40
        $region39: #{tpu_custom_call.1} parent=27 // pred_region
          %s594 = smul.u32 8, %s20
          %s596 = ssub.s32 1536, 1536
          %597 = vsyncadd %s587, %s596
          %s598 = smul.addr %s594, 3
          %s599 = smul.addr %s598, 64
          %s600 = scalar_lea.hbm %s2, %s599
          %s601 = sshll.u32 %s590, 4
          %s602 = int_to_ptr.vmem [resolvable:$true] %s601
          %607 = dma.vmem_to_hbm [thread:$0]  %s602, 1536, %s600, %s587, 192, 192, 12
        $region40: #{tpu_custom_call.1} parent=27 // pred_fallthru
          _
      $region28: #{tpu_custom_call.1} parent=5 // pred_fallthru
        _
      %p608 = scmp.le.s32.totalorder 2, %s15
      // Predicated region
      $region41: #{tpu_custom_call.1} parent=5 // pred_check
        %p609 = pneg %p608
      $region42: #{tpu_custom_call.1} parent=5 // pred_check_branch
        %611 = sbr.rel (%p609) target = $region44
      $region43: #{tpu_custom_call.1} parent=5 // pred_region
        %s612 = ssub.s32 %s15, 2
        // Predicated region
        $region45: #{tpu_custom_call.1} parent=43 // pred_check
          %p613 = pneg %p91
        $region46: #{tpu_custom_call.1} parent=43 // pred_check_branch
          %615 = sbr.rel (%p613) target = $region48
        $region47: #{tpu_custom_call.1} parent=43 // pred_region
          %s616 = sand.u32 %s76, 1
          %s617 = scalar_lea.sflag [#allocation4], %s616
          %s618 = sand.u32 %s76, 1
          %s619 = smul.addr %s618, 96
          %s620 = scalar_lea.vmem [#allocation7], %s619
          %621 = dma.done %s617, 1536
        $region48: #{tpu_custom_call.1} parent=43 // pred_fallthru
          _
      $region44: #{tpu_custom_call.1} parent=5 // pred_fallthru
        _
    $region6: #{tpu_custom_call.1} parent=1 // loop_footer
      %s19 = sadd.s32 1, %s15
    $region7: #{tpu_custom_call.1} parent=1 // loop_footer_branch
      %14 = sbr.rel target = $region3
    $region8: #{tpu_custom_call.1} parent=1 // loop_exit
      _
    %622 = vsyncpa [#allocation3], 1
    %s623 = scalar_lea.sflag [#allocation3], 1
    %624 = vsyncpa %s623, 1
    %625 = vsyncpa [#allocation6], 1
    %626 = vsyncpa [#allocation4], 1
    %s627 = scalar_lea.sflag [#allocation4], 1
    %628 = vsyncpa %s627, 1

</llo_original>
